<compile_context>
chip_gen: v6e
topology: v6e:2x2x1
jax: 0.10.0
libtpu: 0.0.40
codegen_flags: <defaults>
</compile_context>

<pallas_src>
import functools

import jax
import jax.numpy as jnp
import numpy as np
from jax import lax
from jax.experimental import pallas as pl
from jax.experimental.pallas import tpu as pltpu

LANE = 128                       # TPU lane width: keep channels lane-dense.
VMEM_LIMIT = 32 * 1024 * 1024    # scoped VMEM budget, safe on v5e/v6e/v7x.


def _round_up(x, m):
    return (x + m - 1) // m * m


def _pick_tile(n, target):
    """Largest divisor of n that is <= target (>= 1)."""
    best = 1
    for d in range(1, min(n, target) + 1):
        if n % d == 0:
            best = d
    return best


# ----------------------------------------------------------------------------
# Kernel 1: tiled matmul + bias (+ residual) (+ ReLU)      -- used for the
# 1x1 convolutions (conv1, conv3 + residual + relu, shortcut).
# ----------------------------------------------------------------------------
def _mm_bias_kernel(x_ref, w_ref, b_ref, *rest, relu, has_res):
    if has_res:
        res_ref, o_ref = rest
    else:
        (o_ref,) = rest
    acc = jnp.dot(x_ref[...], w_ref[...], preferred_element_type=jnp.float32)
    out = acc + b_ref[...].astype(jnp.float32)
    if has_res:
        out = out + res_ref[...].astype(jnp.float32)
    if relu:
        out = jnp.maximum(out, 0.0)
    o_ref[...] = out.astype(o_ref.dtype)


def matmul_bias(x2d, w, bias, *, relu, residual=None):
    """(M, K) @ (K, Cout) + bias (+ residual) (+ ReLU).

    K and Cout must be multiples of 128 (caller pads channels).
    """
    M, K = x2d.shape
    Cout = w.shape[1]
    tm = min(256, _round_up(M, 8))
    tn = LANE * _pick_tile(Cout // LANE, 4)
    Mp = _round_up(M, tm)
    if Mp != M:
        x2d = jnp.pad(x2d, ((0, Mp - M), (0, 0)))
        if residual is not None:
            residual = jnp.pad(residual, ((0, Mp - M), (0, 0)))
    b2 = bias.reshape(1, Cout)

    in_specs = [pl.BlockSpec((tm, K), lambda i, j: (i, 0)),
                pl.BlockSpec((K, tn), lambda i, j: (0, j)),
                pl.BlockSpec((1, tn), lambda i, j: (0, j))]
    args = [x2d, w, b2]
    if residual is not None:
        in_specs.append(pl.BlockSpec((tm, tn), lambda i, j: (i, j)))
        args.append(residual)

    itemsize = x2d.dtype.itemsize
    cost = pl.CostEstimate(
        flops=2 * Mp * K * Cout,
        transcendentals=0,
        bytes_accessed=(Mp * K + K * Cout + Mp * Cout
                        + (Mp * Cout if residual is not None else 0)) * itemsize)

    out = pl.pallas_call(
        functools.partial(_mm_bias_kernel, relu=relu,
                          has_res=residual is not None),
        grid=(Mp // tm, Cout // tn),
        in_specs=in_specs,
        out_specs=pl.BlockSpec((tm, tn), lambda i, j: (i, j)),
        out_shape=jax.ShapeDtypeStruct((Mp, Cout), x2d.dtype),
        compiler_params=pltpu.CompilerParams(
            dimension_semantics=("parallel", "parallel"),
            vmem_limit_bytes=VMEM_LIMIT),
        cost_estimate=cost,
    )(*args)
    return out[:M]


# ----------------------------------------------------------------------------
# Kernel 2: 3x3 conv (stride handled in-kernel) + bias + ReLU.
#
# The wrapper pre-splits the padded input into stride*stride "phase" images
# (space-to-batch), so every strided tap becomes a contiguous slice inside
# the kernel.  The grid is (batch, output-row tiles); the halo'd row slab of
# each phase is fetched with an explicit async DMA from HBM (pl.ANY).
# ----------------------------------------------------------------------------
def _conv3x3_kernel(xph_hbm, w_ref, b_ref, o_ref, xbuf, sems, *,
                    stride, ht, wo, relu):
    n = pl.program_id(0)
    r = pl.program_id(1)
    s = stride
    nph = s * s
    dh = 2 // s                 # extra halo rows/cols per phase (k=3)
    row0 = r * ht

    # Fetch the halo'd row slab of every phase for this (batch, row-tile).
    copies = []
    for p in range(nph):
        cp = pltpu.make_async_copy(
            xph_hbm.at[n * nph + p, pl.ds(row0, ht + dh)],
            xbuf.at[p], sems.at[p])
        cp.start()
        copies.append(cp)
    for cp in copies:
        cp.wait()

    cinp = xbuf.shape[-1]
    # im2col: one fused MXU contraction of depth 9*Cin instead of 9 small dots.
    cols = []
    for kh in range(3):
        for kw in range(3):
            p = (kh % s) * s + (kw % s)
            tap = xbuf[p, kh // s: kh // s + ht, kw // s: kw // s + wo, :]
            cols.append(tap.reshape(ht * wo, cinp))
    patches = jnp.concatenate(cols, axis=-1)                  # (ht*wo, 9*cinp)

    acc = jnp.dot(patches, w_ref[...], preferred_element_type=jnp.float32)
    out = acc + b_ref[...].astype(jnp.float32)
    if relu:
        out = jnp.maximum(out, 0.0)
    o_ref[...] = out.reshape(1, ht, wo, -1).astype(o_ref.dtype)


def conv3x3_bias(x_nhwc, w2d, bias, *, stride, relu, ht_target=8):
    """3x3 conv, padding=1, given stride, weights already BN-folded & padded.

    x_nhwc: (N, H, W, Cinp); w2d: (9*Cinp, Coutp); bias: (Coutp,).
    """
    N, H, W, Cinp = x_nhwc.shape
    Coutp = w2d.shape[1]
    s = stride
    Ho = (H - 1) // s + 1
    Wo = (W - 1) // s + 1
    dh = 2 // s
    Hpp, Wpp = Ho + dh, Wo + dh
    Hpe, Wpe = s * Hpp, s * Wpp

    # padding=1 plus a little extra bottom/right so the phase split is uniform
    # (the extra zero rows/cols are never selected by a valid output position).
    xp = jnp.pad(x_nhwc, ((0, 0), (1, Hpe - H - 1), (1, Wpe - W - 1), (0, 0)))
    # Space-to-batch phase split (plain XLA): phase (a, b) holds the pixels at
    # (a + s*i, b + s*j) -> in-kernel strided tap reads become contiguous.
    xph = xp.reshape(N, Hpp, s, Wpp, s, Cinp)
    xph = jnp.transpose(xph, (0, 2, 4, 1, 3, 5)).reshape(N * s * s, Hpp, Wpp, Cinp)

    ht = _pick_tile(Ho, ht_target)
    bias2 = bias.reshape(1, Coutp)

    itemsize = x_nhwc.dtype.itemsize
    cost = pl.CostEstimate(
        flops=2 * N * Ho * Wo * w2d.shape[0] * Coutp,
        transcendentals=0,
        bytes_accessed=(xph.size + w2d.size + N * Ho * Wo * Coutp) * itemsize)

    out = pl.pallas_call(
        functools.partial(_conv3x3_kernel, stride=s, ht=ht, wo=Wo, relu=relu),
        grid=(N, Ho // ht),
        in_specs=[pl.BlockSpec(memory_space=pl.ANY),              # phases (HBM)
                  pl.BlockSpec((w2d.shape[0], Coutp), lambda n, r: (0, 0)),
                  pl.BlockSpec((1, Coutp), lambda n, r: (0, 0))],
        out_specs=pl.BlockSpec((1, ht, Wo, Coutp), lambda n, r: (n, r, 0, 0)),
        out_shape=jax.ShapeDtypeStruct((N, Ho, Wo, Coutp), x_nhwc.dtype),
        scratch_shapes=[pltpu.VMEM((s * s, ht + dh, Wpp, Cinp), x_nhwc.dtype),
                        pltpu.SemaphoreType.DMA((s * s,))],
        compiler_params=pltpu.CompilerParams(
            dimension_semantics=("parallel", "parallel"),
            vmem_limit_bytes=VMEM_LIMIT),
        cost_estimate=cost,
    )(xph, w2d, bias2)
    return out


# ----------------------------------------------------------------------------
# Bottleneck module (deterministic synthetic parameters)
# ----------------------------------------------------------------------------
def _fold_bn(gamma, beta, mean, var, eps=1e-5):
    scale = gamma / jnp.sqrt(var + eps)
    bias = beta - mean * scale
    return scale, bias


class Bottleneck:
    expansion = 4

    def __init__(self, in_planes, planes, stride, key):
        ks = jax.random.split(key, 8)

        def conv_w(k, cin, cout, ksize):
            fan_in = cin * ksize * ksize
            bound = 1.0 / np.sqrt(fan_in)
            # stored as (kh, kw, Cin, Cout)
            return jax.random.uniform(k, (ksize, ksize, cin, cout),
                                      jnp.float32, -bound, bound)

        def bn_params(k, c):
            k1, k2, k3, k4 = jax.random.split(k, 4)
            gamma = 1.0 + 0.1 * jax.random.normal(k1, (c,), jnp.float32)
            beta = 0.1 * jax.random.normal(k2, (c,), jnp.float32)
            mean = 0.1 * jax.random.normal(k3, (c,), jnp.float32)
            var = 1.0 + 0.1 * jax.random.uniform(k4, (c,), jnp.float32)
            return _fold_bn(gamma, beta, mean, var)

        self.in_planes, self.planes, self.stride = in_planes, planes, stride
        self.w1 = conv_w(ks[0], in_planes, planes, 1)
        self.s1, self.b1 = bn_params(ks[1], planes)
        self.w2 = conv_w(ks[2], planes, planes, 3)
        self.s2, self.b2 = bn_params(ks[3], planes)
        self.w3 = conv_w(ks[4], planes, self.expansion * planes, 1)
        self.s3, self.b3 = bn_params(ks[5], self.expansion * planes)
        self.has_shortcut = (stride != 1) or (in_planes != self.expansion * planes)
        if self.has_shortcut:
            self.ws = conv_w(ks[6], in_planes, self.expansion * planes, 1)
            self.ss, self.bs = bn_params(ks[7], self.expansion * planes)
        self._prepare()

    def _prepare(self):
        """Fold BN scale into the conv weights; pad channels to LANE multiples."""
        cin_p = _round_up(self.in_planes, LANE)
        p_p = _round_up(self.planes, LANE)
        cout_p = _round_up(self.expansion * self.planes, LANE)
        self.cin_p, self.p_p, self.cout_p = cin_p, p_p, cout_p

        def pad_mat(w2, kp, npad):
            return jnp.pad(w2, ((0, kp - w2.shape[0]), (0, npad - w2.shape[1])))

        def pad_vec(v, npad):
            return jnp.pad(v, (0, npad - v.shape[0]))

        self.w1_p = pad_mat(self.w1[0, 0] * self.s1[None, :], cin_p, p_p)
        self.b1_p = pad_vec(self.b1, p_p)

        w2f = self.w2 * self.s2[None, None, None, :]
        w2f = jnp.pad(w2f, ((0, 0), (0, 0),
                            (0, p_p - self.planes), (0, p_p - self.planes)))
        self.w2_p = w2f.reshape(9 * p_p, p_p)
        self.b2_p = pad_vec(self.b2, p_p)

        self.w3_p = pad_mat(self.w3[0, 0] * self.s3[None, :], p_p, cout_p)
        self.b3_p = pad_vec(self.b3, cout_p)

        if self.has_shortcut:
            self.ws_p = pad_mat(self.ws[0, 0] * self.ss[None, :], cin_p, cout_p)
            self.bs_p = pad_vec(self.bs, cout_p)

    def __call__(self, x_nchw):
        N, Cin, H, W = x_nchw.shape
        x = jnp.transpose(x_nchw, (0, 2, 3, 1))                    # NCHW -> NHWC
        xpad = jnp.pad(x, ((0, 0), (0, 0), (0, 0), (0, self.cin_p - Cin)))

        # conv1 (1x1) + bn1 + relu  -> pure lane-dense matmul over M = N*H*W
        o1 = matmul_bias(xpad.reshape(N * H * W, self.cin_p),
                         self.w1_p, self.b1_p, relu=True)
        o1 = o1.reshape(N, H, W, self.p_p)

        # conv2 (3x3, stride) + bn2 + relu  -> row-tiled, stride in-kernel
        o2 = conv3x3_bias(o1, self.w2_p, self.b2_p,
                          stride=self.stride, relu=True)
        _, Ho, Wo, _ = o2.shape
        M2 = N * Ho * Wo

        # shortcut: 1x1 conv commutes with subsampling -> subsample first
        if self.has_shortcut:
            xs = xpad[:, ::self.stride, ::self.stride, :]
            sc2d = matmul_bias(xs.reshape(M2, self.cin_p),
                               self.ws_p, self.bs_p, relu=False)
        else:
            sc2d = xpad.reshape(M2, self.cin_p)   # identity (cin_p == cout_p)

        # conv3 (1x1) + bn3 + residual add + final relu, fused in one kernel
        o3 = matmul_bias(o2.reshape(M2, self.p_p), self.w3_p, self.b3_p,
                         relu=True, residual=sc2d)
        o3 = o3.reshape(N, Ho, Wo, self.cout_p)[:, :, :, :self.expansion * self.planes]
        return jnp.transpose(o3, (0, 3, 1, 2))                     # NHWC -> NCHW


# ----------------------------------------------------------------------------
# Pure-JAX reference for verification
# ----------------------------------------------------------------------------
def reference_block(block, x_nchw):
    x = jnp.transpose(x_nchw, (0, 2, 3, 1))

    def conv(x, w, stride, pad):
        return lax.conv_general_dilated(
            x, w, (stride, stride), [(pad, pad), (pad, pad)],
            dimension_numbers=("NHWC", "HWIO", "NHWC"))

    out = jnp.maximum(conv(x, block.w1, 1, 0) * block.s1 + block.b1, 0.0)
    out = jnp.maximum(conv(out, block.w2, block.stride, 1) * block.s2 + block.b2, 0.0)
    out = conv(out, block.w3, 1, 0) * block.s3 + block.b3
    if block.has_shortcut:
        sc = conv(x, block.ws, block.stride, 0) * block.ss + block.bs
    else:
        sc = x
    out = jnp.maximum(out + sc, 0.0)
    return jnp.transpose(out, (0, 3, 1, 2))


if __name__ == "__main__":
    key = jax.random.PRNGKey(0)
    kx, kp = jax.random.split(key)

    # PyTorch-style NCHW input, small shapes: batch=2, in_planes=4, 16x16.
    x = jax.random.normal(kx, (2, 4, 16, 16), jnp.float32)
    block = Bottleneck(in_planes=4, planes=8, stride=2, key=kp)

    y = jax.block_until_ready(block(x))
    assert y.shape == (2, 32, 8, 8), y.shape

    y_ref = jax.block_until_ready(reference_block(block, x))
    np.testing.assert_allclose(np.asarray(y), np.asarray(y_ref),
                               rtol=1e-3, atol=1e-3)
    print("KERNEL_OK")
</pallas_src>

<mosaic_0001>
module attributes {stable_mosaic.version = 11 : i64} {
  func.func @_mm_bias_kernel(%arg0: i32, %arg1: i32, %arg2: memref<256x128xf32, #tpu.memory_space<vmem>>, %arg3: memref<128x128xf32, #tpu.memory_space<vmem>>, %arg4: memref<1x128xf32, #tpu.memory_space<vmem>>, %arg5: memref<256x128xf32, #tpu.memory_space<vmem>>) attributes {dimension_semantics = [#tpu.dimension_semantics<parallel>, #tpu.dimension_semantics<parallel>], iteration_bounds = array<i64: 2, 1>, scalar_prefetch = 0 : i64, scratch_operands = 0 : i64, tpu.core_type = #tpu.core_type<tc>, window_params = [{transform_indices = @transform_0, window_bounds = array<i64: 256, 128>}, {transform_indices = @transform_1, window_bounds = array<i64: 128, 128>}, {transform_indices = @transform_2, window_bounds = array<i64: 1, 128>}, {transform_indices = @transform_3, window_bounds = array<i64: 256, 128>}]} {
    %c0 = arith.constant 0 : index
    %c0_0 = arith.constant 0 : index
    %0 = vector.load %arg2[%c0, %c0_0] : memref<256x128xf32, #tpu.memory_space<vmem>>, vector<256x128xf32>
    %c0_1 = arith.constant 0 : index
    %c0_2 = arith.constant 0 : index
    %1 = vector.load %arg3[%c0_1, %c0_2] : memref<128x128xf32, #tpu.memory_space<vmem>>, vector<128x128xf32>
    %cst = arith.constant dense<0.000000e+00> : vector<256x128xf32>
    %2 = tpu.matmul %0, %1, %cst {dimension_numbers = #tpu.dot_dimension_numbers<[1], [0], [0], [1], [0, 0, 1, 1], [], []>} : vector<256x128xf32>, vector<128x128xf32>, vector<256x128xf32> -> vector<256x128xf32>
    %c0_3 = arith.constant 0 : index
    %c0_4 = arith.constant 0 : index
    %3 = vector.load %arg4[%c0_3, %c0_4] : memref<1x128xf32, #tpu.memory_space<vmem>>, vector<1x128xf32>
    %4 = vector.broadcast %3 : vector<1x128xf32> to vector<256x128xf32>
    %5 = arith.addf %2, %4 : vector<256x128xf32>
    %cst_5 = arith.constant 0.000000e+00 : f32
    %6 = vector.broadcast %cst_5 : f32 to vector<256x128xf32>
    %7 = arith.maximumf %5, %6 : vector<256x128xf32>
    %c0_6 = arith.constant 0 : index
    %c0_7 = arith.constant 0 : index
    %8 = vector.load %arg5[%c0_6, %c0_7] : memref<256x128xf32, #tpu.memory_space<vmem>>, vector<256x128xf32>
    tpu.vector_store %arg5[%c0_6, %c0_7], %7 {strides = array<i32>} : memref<256x128xf32, #tpu.memory_space<vmem>>, vector<256x128xf32>,
    return
  }
  func.func @transform_0(%arg0: i32, %arg1: i32) -> (i32, i32) {
    %c0_i32 = arith.constant 0 : i32
    %c0_i32_0 = arith.constant 0 : i32
    return %arg0, %c0_i32 : i32, i32
  }
  func.func @transform_1(%arg0: i32, %arg1: i32) -> (i32, i32) {
    %c0_i32 = arith.constant 0 : i32
    %c0_i32_0 = arith.constant 0 : i32
    return %c0_i32, %arg1 : i32, i32
  }
  func.func @transform_2(%arg0: i32, %arg1: i32) -> (i32, i32) {
    %c0_i32 = arith.constant 0 : i32
    %c0_i32_0 = arith.constant 0 : i32
    return %c0_i32, %arg1 : i32, i32
  }
  func.func @transform_3(%arg0: i32, %arg1: i32) -> (i32, i32) {
    %c0_i32 = arith.constant 0 : i32
    return %arg0, %arg1 : i32, i32
  }
}

</mosaic_0001>

<llo_original>
// kernel: tpu_custom_call.1
$region0: #{tpu_custom_call.1}
  #allocation0 [shape = 'u32[]', space=smem, size = 0x4, offset = 0x4, fixed_abs, tag = 'smem constant byte address 0x4 - core index']
  #allocation1 [shape = 'u32[144,128]{1,0:T(1,128)}', space=vmem, size = 0x12000, scoped, tag = 'internal scratch']
  %s0 = inlined_call_operand.hbm [shape: f32[512,128], index: 0, kind: input, shape index: {}]
  %s1 = inlined_call_operand.hbm [shape: f32[128,128], index: 1, kind: input, shape index: {}]
  %s2 = inlined_call_operand.vmem [shape: f32[1,128], index: 2, kind: input, shape index: {}]
  %s3 = inlined_call_operand.hbm [shape: f32[512,128], index: 3, kind: output, shape index: {}]
  %s4 = sld [smem:[#allocation0]]
  $region53: #{tpu_custom_call.1} parent=0
    _
  %s6 = ssub.s32 1, %s4
  %s7 = scalar_select 0, %s6, %s4
  $region1: #{tpu_custom_call.1} parent=0
    #allocation2 [shape = 'u8[262144]{0}', space=vmem, size = 0x40000, scoped, tag = 'input window, operand 0']
    #allocation3 [shape = 's32[2]{0}', space=sflag, size = 0x8, scoped, tag = 'scoped memory for tpu_custom_call.1']
    #allocation4 [shape = 's32[2]{0}', space=sflag, size = 0x8, scoped, tag = 'scoped memory for tpu_custom_call.1']
    #allocation5 [shape = 'u8[65536]{0}', space=vmem, size = 0x10000, scoped, tag = 'input window, operand 1, single buffered']
    #allocation6 [shape = 's32[1]{0}', space=sflag, size = 0x4, scoped, tag = 'scoped memory for tpu_custom_call.1']
    #allocation7 [shape = 'u8[262144]{0}', space=vmem, size = 0x40000, scoped, tag = 'output window, operand 0']
    %8 = vsyncpa [#allocation3], 0
    %s9 = scalar_lea.sflag [#allocation3], 1
    %10 = vsyncpa %s9, 0
    %11 = vsyncpa [#allocation6], 0
    %12 = vsyncpa [#allocation4], 0
    %s13 = scalar_lea.sflag [#allocation4], 1
    %14 = vsyncpa %s13, 0
    loop: start=0, step=1, limit=4
    $region2: #{tpu_custom_call.1} parent=1 // loop_pre_header
      _
    $region3: #{tpu_custom_call.1} parent=1 // loop_header
      %s16 = sphi 0, %s20
      %p17 = scmp.ge.s32.totalorder %s16, 4
      %s23 = sphi 0, %s35
      %s24 = sphi 0, %s31
      %s25 = sphi 0, %s23
      %s26 = sphi 0, %s24
      %s27 = sphi 0, %s25
      %s28 = sphi 0, %s26
      %s38 = sphi 0, %s40
      %s41 = sphi 0, %s38
      %s42 = sphi 0, %s41
      %s58 = sphi 0, %s42
      %s64 = sphi 0, %s66
      %s67 = sphi 0, %s64
      %s68 = sphi 0, %s67
      %s84 = sphi 0, %s68
      %s90 = sphi 0, %s92
      %s93 = sphi 0, %s90
      %s94 = sphi 0, %s93
      %s110 = sphi 0, %s94
      %s118 = sphi 0, %s120
      %s121 = sphi 0, %s118
      %s122 = sphi 0, %s121
      %s138 = sphi 0, %s122
    $region4: #{tpu_custom_call.1} parent=1 // loop_header_branch
      %19 = sbr.rel (%p17) target = $region8
    $region5: #{tpu_custom_call.1} parent=1 // loop_body
      %s21 = ssub.s32 %s16, 1
      %s22 = ssub.s32 %s16, 2
      %s29 = sadd.s32 1, %s24
      %p30 = scmp.ge.s32.totalorder %s29, 1
      %s31 = scalar_select %p30, 0, %s29
      %s32 = sadd.s32 1, %s23
      %s33 = scalar_select %p30, %s32, %s23
      %p34 = scmp.ge.s32.totalorder %s33, 2
      %s35 = scalar_select %p34, 0, %s33
      %s36 = ssub.s32 %s23, %s35
      %p37 = scmp.eq.s32.totalorder %s36, 0
      %s39 = sadd.s32 %s38, 1
      %s40 = scalar_select %p37, %s38, %s39
      %p43 = pneg %p37
      %p44 = scmp.eq.s32.totalorder %s16, 1
      %p45 = por %p43, %p44
      %p46 = scmp.ne.s32.totalorder %s38, %s41
      %p47 = scmp.eq.s32.totalorder %s16, 0
      %p48 = por %p46, %p47
      %p49 = scmp.ne.s32.totalorder %s38, %s41
      %p50 = scmp.eq.s32.totalorder %s21, 1
      %p51 = por %p49, %p50
      %p52 = scmp.ne.s32.totalorder %s41, %s42
      %p53 = scmp.eq.s32.totalorder %s21, 0
      %p54 = por %p52, %p53
      %p55 = scmp.ne.s32.totalorder %s41, %s42
      %p56 = scmp.eq.s32.totalorder %s22, 1
      %p57 = por %p55, %p56
      %p59 = scmp.ne.s32.totalorder %s42, %s58
      %p60 = scmp.eq.s32.totalorder %s22, 0
      %p61 = por %p59, %p60
      %s62 = ssub.s32 %s24, %s31
      %p63 = scmp.eq.s32.totalorder %s62, 0
      %s65 = sadd.s32 %s64, 1
      %s66 = scalar_select %p63, %s64, %s65
      %p69 = pneg %p63
      %p70 = scmp.eq.s32.totalorder %s16, 1
      %p71 = por %p69, %p70
      %p72 = scmp.ne.s32.totalorder %s64, %s67
      %p73 = scmp.eq.s32.totalorder %s16, 0
      %p74 = por %p72, %p73
      %p75 = scmp.ne.s32.totalorder %s64, %s67
      %p76 = scmp.eq.s32.totalorder %s21, 1
      %p77 = por %p75, %p76
      %p78 = scmp.ne.s32.totalorder %s67, %s68
      %p79 = scmp.eq.s32.totalorder %s21, 0
      %p80 = por %p78, %p79
      %p81 = scmp.ne.s32.totalorder %s67, %s68
      %p82 = scmp.eq.s32.totalorder %s22, 1
      %p83 = por %p81, %p82
      %p85 = scmp.ne.s32.totalorder %s68, %s84
      %p86 = scmp.eq.s32.totalorder %s22, 0
      %p87 = por %p85, %p86
      %s88 = ssub.s32 %s24, %s31
      %p89 = scmp.eq.s32.totalorder %s88, 0
      %s91 = sadd.s32 %s90, 1
      %s92 = scalar_select %p89, %s90, %s91
      %p95 = pneg %p89
      %p96 = scmp.eq.s32.totalorder %s16, 1
      %p97 = por %p95, %p96
      %p98 = scmp.ne.s32.totalorder %s90, %s93
      %p99 = scmp.eq.s32.totalorder %s16, 0
      %p100 = por %p98, %p99
      %p101 = scmp.ne.s32.totalorder %s90, %s93
      %p102 = scmp.eq.s32.totalorder %s21, 1
      %p103 = por %p101, %p102
      %p104 = scmp.ne.s32.totalorder %s93, %s94
      %p105 = scmp.eq.s32.totalorder %s21, 0
      %p106 = por %p104, %p105
      %p107 = scmp.ne.s32.totalorder %s93, %s94
      %p108 = scmp.eq.s32.totalorder %s22, 1
      %p109 = por %p107, %p108
      %p111 = scmp.ne.s32.totalorder %s94, %s110
      %p112 = scmp.eq.s32.totalorder %s22, 0
      %p113 = por %p111, %p112
      %s114 = ssub.s32 %s23, %s35
      %s115 = ssub.s32 %s24, %s31
      %s116 = sor.u32 %s114, %s115
      %p117 = scmp.eq.s32.totalorder %s116, 0
      %s119 = sadd.s32 %s118, 1
      %s120 = scalar_select %p117, %s118, %s119
      %p123 = pneg %p117
      %p124 = scmp.eq.s32.totalorder %s16, 1
      %p125 = por %p123, %p124
      %p126 = scmp.ne.s32.totalorder %s118, %s121
      %p127 = scmp.eq.s32.totalorder %s16, 0
      %p128 = por %p126, %p127
      %p129 = scmp.ne.s32.totalorder %s118, %s121
      %p130 = scmp.eq.s32.totalorder %s21, 1
      %p131 = por %p129, %p130
      %p132 = scmp.ne.s32.totalorder %s121, %s122
      %p133 = scmp.eq.s32.totalorder %s21, 0
      %p134 = por %p132, %p133
      %p135 = scmp.ne.s32.totalorder %s121, %s122
      %p136 = scmp.eq.s32.totalorder %s22, 1
      %p137 = por %p135, %p136
      %p139 = scmp.ne.s32.totalorder %s122, %s138
      %p140 = scmp.eq.s32.totalorder %s22, 0
      %p141 = por %p139, %p140
      %p142 = scmp.le.s32.totalorder 1, %s16
      %p143 = scmp.lt.s32.totalorder %s16, 3
      %p144 = pnand %p142, %p143
      %p145 = pneg %p144
      // Predicated region
      $region9: #{tpu_custom_call.1} parent=5 // pred_check
        _
      $region10: #{tpu_custom_call.1} parent=5 // pred_check_branch
        %147 = sbr.rel (%p144) target = $region12
      $region11: #{tpu_custom_call.1} parent=5 // pred_region
        %s148 = ssub.s32 %s16, 1
        // Predicated region
        $region13: #{tpu_custom_call.1} parent=11 // pred_check
          %p149 = pneg %p80
        $region14: #{tpu_custom_call.1} parent=11 // pred_check_branch
          %151 = sbr.rel (%p149) target = $region16
        $region15: #{tpu_custom_call.1} parent=11 // pred_region
          %s153 = ssub.s32 2048, 2048
          %154 = vsyncadd [#allocation6], %s153
          %s155 = smul.addr %s26, 128
          %s156 = scalar_lea.hbm %s1, %s155
          %s157 = sshll.u32 [#allocation5], 4
          %s158 = int_to_ptr.vmem [resolvable:$true] %s157
          %163 = dma.hbm_to_vmem [thread:$0]  %s156, 2048, %s158, [#allocation6], 128, 128, 8
        $region16: #{tpu_custom_call.1} parent=11 // pred_fallthru
          _
        // Predicated region
        $region17: #{tpu_custom_call.1} parent=11 // pred_check
          %p164 = pneg %p106
        $region18: #{tpu_custom_call.1} parent=11 // pred_check_branch
          %166 = sbr.rel (%p164) target = $region20
        $region19: #{tpu_custom_call.1} parent=11 // pred_region
          %p167 = scmp.lt.s32.totalorder %s26, 0
          %s168 = scalar_select %p167, %s26, 0
          %s169 = scalar_lea.vmem %s2, %s168
        $region20: #{tpu_custom_call.1} parent=11 // pred_fallthru
          _
      $region12: #{tpu_custom_call.1} parent=5 // pred_fallthru
        _
      %p170 = scmp.lt.s32.totalorder %s16, 2
      // Predicated region
      $region21: #{tpu_custom_call.1} parent=5 // pred_check
        %p171 = pneg %p170
      $region22: #{tpu_custom_call.1} parent=5 // pred_check_branch
        %173 = sbr.rel (%p171) target = $region24
      $region23: #{tpu_custom_call.1} parent=5 // pred_region
        // Predicated region
        $region25: #{tpu_custom_call.1} parent=23 // pred_check
          %p174 = pneg %p48
        $region26: #{tpu_custom_call.1} parent=23 // pred_check_branch
          %176 = sbr.rel (%p174) target = $region28
        $region27: #{tpu_custom_call.1} parent=23 // pred_region
          %s177 = sand.u32 %s38, 1
          %s178 = scalar_lea.sflag [#allocation3], %s177
          %s179 = sand.u32 %s38, 1
          %s180 = smul.addr %s179, 256
          %s181 = scalar_lea.vmem [#allocation2], %s180
          %s182 = smul.u32 32, %s23
          %s184 = ssub.s32 4096, 4096
          %185 = vsyncadd %s178, %s184
          %s186 = smul.addr %s182, 128
          %s187 = scalar_lea.hbm %s0, %s186
          %s188 = sshll.u32 %s181, 4
          %s189 = int_to_ptr.vmem [resolvable:$true] %s188
          %194 = dma.hbm_to_vmem [thread:$0]  %s187, 4096, %s189, %s178, 128, 128, 8
        $region28: #{tpu_custom_call.1} parent=23 // pred_fallthru
          _
      $region24: #{tpu_custom_call.1} parent=5 // pred_fallthru
        _
      %p195 = scmp.le.s32.totalorder 1, %s16
      %p196 = scmp.lt.s32.totalorder %s16, 3
      %p197 = pnand %p195, %p196
      %p198 = pneg %p197
      // Predicated region
      $region29: #{tpu_custom_call.1} parent=5 // pred_check
        _
      $region30: #{tpu_custom_call.1} parent=5 // pred_check_branch
        %200 = sbr.rel (%p197) target = $region32
      $region31: #{tpu_custom_call.1} parent=5 // pred_region
        %s201 = ssub.s32 %s16, 1
        %s202 = sand.u32 %s41, 1
        %s203 = scalar_lea.sflag [#allocation3], %s202
        %s204 = sand.u32 %s41, 1
        %s205 = smul.addr %s204, 256
        %s206 = scalar_lea.vmem [#allocation2], %s205
        // Predicated region
        $region33: #{tpu_custom_call.1} parent=31 // pred_check
          %p207 = pneg %p54
        $region34: #{tpu_custom_call.1} parent=31 // pred_check_branch
          %209 = sbr.rel (%p207) target = $region36
        $region35: #{tpu_custom_call.1} parent=31 // pred_region
          %210 = dma.done %s203, 4096
        $region36: #{tpu_custom_call.1} parent=31 // pred_fallthru
          _
        // Predicated region
        $region37: #{tpu_custom_call.1} parent=31 // pred_check
          %p211 = pneg %p80
        $region38: #{tpu_custom_call.1} parent=31 // pred_check_branch
          %213 = sbr.rel (%p211) target = $region40
        $region39: #{tpu_custom_call.1} parent=31 // pred_region
          %214 = dma.done [#allocation6], 2048
        $region40: #{tpu_custom_call.1} parent=31 // pred_fallthru
          _
        %s215 = sand.u32 %s41, 1
        %s216 = scalar_lea.sflag [#allocation3], %s215
        %s217 = sand.u32 %s41, 1
        %s218 = smul.addr %s217, 256
        %s219 = scalar_lea.vmem [#allocation2], %s218
        %p220 = pneg %p54
        %p221 = pneg %p51
        %p222 = pneg %p80
        %p223 = pneg %p77
        %p224 = scmp.lt.s32.totalorder %s26, 0
        %s225 = scalar_select %p224, %s26, 0
        %s226 = scalar_lea.vmem %s2, %s225
        %p227 = pneg %p106
        %p228 = pneg %p103
        %p229 = pneg %p134
        %p230 = pneg %p131
        %s231 = sand.u32 %s121, 1
        %s232 = scalar_lea.sflag [#allocation4], %s231
        %s233 = sand.u32 %s121, 1
        %s234 = smul.addr %s233, 256
        %s235 = scalar_lea.vmem [#allocation7], %s234
        %s236 = smul.u32 32, %s25
        %p237 = scmp.lt.s32.totalorder %s26, 0
        %s238 = scalar_select %p237, %s26, 0
        %s239 = scalar_lea.vmem %s2, %s238
        %s240 = smul.u32 32, %s25
        %v241 = vld [vmem:[%s206] sm:$0xff]
        %v242 = vld [vmem:[%s206 + $0x8] sm:$0xff]
        %v243 = vld [vmem:[%s206 + $0x10] sm:$0xff]
        %v244 = vld [vmem:[%s206 + $0x18] sm:$0xff]
        %v245 = vld [vmem:[%s206 + $0x20] sm:$0xff]
        %v246 = vld [vmem:[%s206 + $0x28] sm:$0xff]
        %v247 = vld [vmem:[%s206 + $0x30] sm:$0xff]
        %v248 = vld [vmem:[%s206 + $0x38] sm:$0xff]
        %v249 = vld [vmem:[%s206 + $0x40] sm:$0xff]
        %v250 = vld [vmem:[%s206 + $0x48] sm:$0xff]
        %v251 = vld [vmem:[%s206 + $0x50] sm:$0xff]
        %v252 = vld [vmem:[%s206 + $0x58] sm:$0xff]
        %v253 = vld [vmem:[%s206 + $0x60] sm:$0xff]
        %v254 = vld [vmem:[%s206 + $0x68] sm:$0xff]
        %v255 = vld [vmem:[%s206 + $0x70] sm:$0xff]
        %v256 = vld [vmem:[%s206 + $0x78] sm:$0xff]
        %v257 = vld [vmem:[%s206 + $0x80] sm:$0xff]
        %v258 = vld [vmem:[%s206 + $0x88] sm:$0xff]
        %v259 = vld [vmem:[%s206 + $0x90] sm:$0xff]
        %v260 = vld [vmem:[%s206 + $0x98] sm:$0xff]
        %v261 = vld [vmem:[%s206 + $0xa0] sm:$0xff]
        %v262 = vld [vmem:[%s206 + $0xa8] sm:$0xff]
        %v263 = vld [vmem:[%s206 + $0xb0] sm:$0xff]
        %v264 = vld [vmem:[%s206 + $0xb8] sm:$0xff]
        %v265 = vld [vmem:[%s206 + $0xc0] sm:$0xff]
        %v266 = vld [vmem:[%s206 + $0xc8] sm:$0xff]
        %v267 = vld [vmem:[%s206 + $0xd0] sm:$0xff]
        %v268 = vld [vmem:[%s206 + $0xd8] sm:$0xff]
        %v269 = vld [vmem:[%s206 + $0xe0] sm:$0xff]
        %v270 = vld [vmem:[%s206 + $0xe8] sm:$0xff]
        %v271 = vld [vmem:[%s206 + $0xf0] sm:$0xff]
        %v272 = vld [vmem:[%s206 + $0xf8] sm:$0xff]
        %v273 = vld [vmem:[#allocation5] sm:$0xff]
        %v274 = vld [vmem:[#allocation5 + $0x8] sm:$0xff]
        %v275 = vld [vmem:[#allocation5 + $0x10] sm:$0xff]
        %v276 = vld [vmem:[#allocation5 + $0x18] sm:$0xff]
        %v277 = vld [vmem:[#allocation5 + $0x20] sm:$0xff]
        %v278 = vld [vmem:[#allocation5 + $0x28] sm:$0xff]
        %v279 = vld [vmem:[#allocation5 + $0x30] sm:$0xff]
        %v280 = vld [vmem:[#allocation5 + $0x38] sm:$0xff]
        %v281 = vld [vmem:[#allocation5 + $0x40] sm:$0xff]
        %v282 = vld [vmem:[#allocation5 + $0x48] sm:$0xff]
        %v283 = vld [vmem:[#allocation5 + $0x50] sm:$0xff]
        %v284 = vld [vmem:[#allocation5 + $0x58] sm:$0xff]
        %v285 = vld [vmem:[#allocation5 + $0x60] sm:$0xff]
        %v286 = vld [vmem:[#allocation5 + $0x68] sm:$0xff]
        %v287 = vld [vmem:[#allocation5 + $0x70] sm:$0xff]
        %v288 = vld [vmem:[#allocation5 + $0x78] sm:$0xff]
        %v289 = vld [vmem:[%s239] sm:$0x1]
        %v291 = vlaneseq
        %v292 = vshrl.u32 %v291, 7
        %v293 = vsub.s32 0, %v292
        %v294 = vrot.slane %v289, %v293
        %296 = vmatprep.subr.mxu0 0.0
        %297 = vmatpush1.msra.mxu0 %v288
        %298 = vmatprep.subr.mxu0 0.0
        %299 = vmatpush1.msra.mxu0 %v287
        %300 = vmatprep.subr.mxu0 0.0
        %301 = vmatpush1.msra.mxu0 %v286
        %302 = vmatprep.subr.mxu0 0.0
        %303 = vmatpush1.msra.mxu0 %v285
        %304 = vmatprep.subr.mxu0 0.0
        %305 = vmatpush1.msra.mxu0 %v284
        %306 = vmatprep.subr.mxu0 0.0
        %307 = vmatpush1.msra.mxu0 %v283
        %308 = vmatprep.subr.mxu0 0.0
        %309 = vmatpush1.msra.mxu0 %v282
        %310 = vmatprep.subr.mxu0 0.0
        %311 = vmatpush1.msra.mxu0 %v281
        %312 = vmatprep.subr.mxu0 0.0
        %313 = vmatpush1.msra.mxu0 %v280
        %314 = vmatprep.subr.mxu0 0.0
        %315 = vmatpush1.msra.mxu0 %v279
        %316 = vmatprep.subr.mxu0 0.0
        %317 = vmatpush1.msra.mxu0 %v278
        %318 = vmatprep.subr.mxu0 0.0
        %319 = vmatpush1.msra.mxu0 %v277
        %320 = vmatprep.subr.mxu0 0.0
        %321 = vmatpush1.msra.mxu0 %v276
        %322 = vmatprep.subr.mxu0 0.0
        %323 = vmatpush1.msra.mxu0 %v275
        %324 = vmatprep.subr.mxu0 0.0
        %325 = vmatpush1.msra.mxu0 %v274
        %326 = vmatprep.subr.mxu0 0.0
        %327 = vmatpush1.msra.mxu0 %v273
        %328 = vmatprep.subr.mxu0 0.0
        %329 = vmatpush2.msra.mxu0 0.0
        %330 = vmatprep.subr.mxu0 0.0
        %331 = vmatpush2.msra.mxu0 0.0
        %332 = vmatprep.subr.mxu0 0.0
        %333 = vmatpush2.msra.mxu0 0.0
        %334 = vmatprep.subr.mxu0 0.0
        %335 = vmatpush2.msra.mxu0 0.0
        %336 = vmatprep.subr.mxu0 0.0
        %337 = vmatpush2.msra.mxu0 0.0
        %338 = vmatprep.subr.mxu0 0.0
        %339 = vmatpush2.msra.mxu0 0.0
        %340 = vmatprep.subr.mxu0 0.0
        %341 = vmatpush2.msra.mxu0 0.0
        %342 = vmatprep.subr.mxu0 0.0
        %343 = vmatpush2.msra.mxu0 0.0
        %344 = vmatprep.subr.mxu0 0.0
        %345 = vmatpush2.msra.mxu0 0.0
        %346 = vmatprep.subr.mxu0 0.0
        %347 = vmatpush2.msra.mxu0 0.0
        %348 = vmatprep.subr.mxu0 0.0
        %349 = vmatpush2.msra.mxu0 0.0
        %350 = vmatprep.subr.mxu0 0.0
        %351 = vmatpush2.msra.mxu0 0.0
        %352 = vmatprep.subr.mxu0 0.0
        %353 = vmatpush2.msra.mxu0 0.0
        %354 = vmatprep.subr.mxu0 0.0
        %355 = vmatpush2.msra.mxu0 0.0
        %356 = vmatprep.subr.mxu0 0.0
        %357 = vmatpush2.msra.mxu0 0.0
        %358 = vmatprep.subr.mxu0 0.0
        %359 = vmatpush2.msra.mxu0 0.0
        %360 = vmatprep.mubr.f32.mxu0 0.0
        %361 = vmatmul.mubr.f32.gmra.mxu0 %v241
        %v362 = vpop.f32.mrf.mxu0
        %v363 = vadd.f32 %v294, %v362
        %v364 = vpop.f32.mrf.mxu0
        %365 = vmatprep.mubr.f32.mxu0 0.0
        %366 = vmatmul.mubr.f32.gmra.mxu0 %v242
        %v367 = vpop.f32.mrf.mxu0
        %v368 = vadd.f32 %v294, %v367
        %v369 = vpop.f32.mrf.mxu0
        %370 = vmatprep.mubr.f32.mxu0 0.0
        %371 = vmatmul.mubr.f32.gmra.mxu0 %v243
        %v372 = vpop.f32.mrf.mxu0
        %v373 = vadd.f32 %v294, %v372
        %v374 = vpop.f32.mrf.mxu0
        %375 = vmatprep.mubr.f32.mxu0 0.0
        %376 = vmatmul.mubr.f32.gmra.mxu0 %v244
        %v377 = vpop.f32.mrf.mxu0
        %v378 = vadd.f32 %v294, %v377
        %v379 = vpop.f32.mrf.mxu0
        %380 = vmatprep.mubr.f32.mxu0 0.0
        %381 = vmatmul.mubr.f32.gmra.mxu0 %v245
        %v382 = vpop.f32.mrf.mxu0
        %v383 = vadd.f32 %v294, %v382
        %v384 = vpop.f32.mrf.mxu0
        %385 = vmatprep.mubr.f32.mxu0 0.0
        %386 = vmatmul.mubr.f32.gmra.mxu0 %v246
        %v387 = vpop.f32.mrf.mxu0
        %v388 = vadd.f32 %v294, %v387
        %v389 = vpop.f32.mrf.mxu0
        %390 = vmatprep.mubr.f32.mxu0 0.0
        %391 = vmatmul.mubr.f32.gmra.mxu0 %v247
        %v392 = vpop.f32.mrf.mxu0
        %v393 = vadd.f32 %v294, %v392
        %v394 = vpop.f32.mrf.mxu0
        %395 = vmatprep.mubr.f32.mxu0 0.0
        %396 = vmatmul.mubr.f32.gmra.mxu0 %v248
        %v397 = vpop.f32.mrf.mxu0
        %v398 = vadd.f32 %v294, %v397
        %v399 = vpop.f32.mrf.mxu0
        %400 = vmatprep.mubr.f32.mxu0 0.0
        %401 = vmatmul.mubr.f32.gmra.mxu0 %v249
        %v402 = vpop.f32.mrf.mxu0
        %v403 = vadd.f32 %v294, %v402
        %v404 = vpop.f32.mrf.mxu0
        %405 = vmatprep.mubr.f32.mxu0 0.0
        %406 = vmatmul.mubr.f32.gmra.mxu0 %v250
        %v407 = vpop.f32.mrf.mxu0
        %v408 = vadd.f32 %v294, %v407
        %v409 = vpop.f32.mrf.mxu0
        %410 = vmatprep.mubr.f32.mxu0 0.0
        %411 = vmatmul.mubr.f32.gmra.mxu0 %v251
        %v412 = vpop.f32.mrf.mxu0
        %v413 = vadd.f32 %v294, %v412
        %v414 = vpop.f32.mrf.mxu0
        %415 = vmatprep.mubr.f32.mxu0 0.0
        %416 = vmatmul.mubr.f32.gmra.mxu0 %v252
        %v417 = vpop.f32.mrf.mxu0
        %v418 = vadd.f32 %v294, %v417
        %v419 = vpop.f32.mrf.mxu0
        %420 = vmatprep.mubr.f32.mxu0 0.0
        %421 = vmatmul.mubr.f32.gmra.mxu0 %v253
        %v422 = vpop.f32.mrf.mxu0
        %v423 = vadd.f32 %v294, %v422
        %v424 = vpop.f32.mrf.mxu0
        %425 = vmatprep.mubr.f32.mxu0 0.0
        %426 = vmatmul.mubr.f32.gmra.mxu0 %v254
        %v427 = vpop.f32.mrf.mxu0
        %v428 = vadd.f32 %v294, %v427
        %v429 = vpop.f32.mrf.mxu0
        %430 = vmatprep.mubr.f32.mxu0 0.0
        %431 = vmatmul.mubr.f32.gmra.mxu0 %v255
        %v432 = vpop.f32.mrf.mxu0
        %v433 = vadd.f32 %v294, %v432
        %v434 = vpop.f32.mrf.mxu0
        %435 = vmatprep.mubr.f32.mxu0 0.0
        %436 = vmatmul.mubr.f32.gmra.mxu0 %v256
        %v437 = vpop.f32.mrf.mxu0
        %v438 = vadd.f32 %v294, %v437
        %v439 = vpop.f32.mrf.mxu0
        %440 = vmatprep.mubr.f32.mxu0 0.0
        %441 = vmatmul.mubr.f32.gmra.mxu0 %v257
        %v442 = vpop.f32.mrf.mxu0
        %v443 = vadd.f32 %v294, %v442
        %v444 = vpop.f32.mrf.mxu0
        %445 = vmatprep.mubr.f32.mxu0 0.0
        %446 = vmatmul.mubr.f32.gmra.mxu0 %v258
        %v447 = vpop.f32.mrf.mxu0
        %v448 = vadd.f32 %v294, %v447
        %v449 = vpop.f32.mrf.mxu0
        %450 = vmatprep.mubr.f32.mxu0 0.0
        %451 = vmatmul.mubr.f32.gmra.mxu0 %v259
        %v452 = vpop.f32.mrf.mxu0
        %v453 = vadd.f32 %v294, %v452
        %v454 = vpop.f32.mrf.mxu0
        %455 = vmatprep.mubr.f32.mxu0 0.0
        %456 = vmatmul.mubr.f32.gmra.mxu0 %v260
        %v457 = vpop.f32.mrf.mxu0
        %v458 = vadd.f32 %v294, %v457
        %v459 = vpop.f32.mrf.mxu0
        %460 = vmatprep.mubr.f32.mxu0 0.0
        %461 = vmatmul.mubr.f32.gmra.mxu0 %v261
        %v462 = vpop.f32.mrf.mxu0
        %v463 = vadd.f32 %v294, %v462
        %v464 = vpop.f32.mrf.mxu0
        %465 = vmatprep.mubr.f32.mxu0 0.0
        %466 = vmatmul.mubr.f32.gmra.mxu0 %v262
        %v467 = vpop.f32.mrf.mxu0
        %v468 = vadd.f32 %v294, %v467
        %v469 = vpop.f32.mrf.mxu0
        %470 = vmatprep.mubr.f32.mxu0 0.0
        %471 = vmatmul.mubr.f32.gmra.mxu0 %v263
        %v472 = vpop.f32.mrf.mxu0
        %v473 = vadd.f32 %v294, %v472
        %v474 = vpop.f32.mrf.mxu0
        %475 = vmatprep.mubr.f32.mxu0 0.0
        %476 = vmatmul.mubr.f32.gmra.mxu0 %v264
        %v477 = vpop.f32.mrf.mxu0
        %v478 = vadd.f32 %v294, %v477
        %v479 = vpop.f32.mrf.mxu0
        %480 = vmatprep.mubr.f32.mxu0 0.0
        %481 = vmatmul.mubr.f32.gmra.mxu0 %v265
        %v482 = vpop.f32.mrf.mxu0
        %v483 = vadd.f32 %v294, %v482
        %v484 = vpop.f32.mrf.mxu0
        %485 = vmatprep.mubr.f32.mxu0 0.0
        %486 = vmatmul.mubr.f32.gmra.mxu0 %v266
        %v487 = vpop.f32.mrf.mxu0
        %v488 = vadd.f32 %v294, %v487
        %v489 = vpop.f32.mrf.mxu0
        %490 = vmatprep.mubr.f32.mxu0 0.0
        %491 = vmatmul.mubr.f32.gmra.mxu0 %v267
        %v492 = vpop.f32.mrf.mxu0
        %v493 = vadd.f32 %v294, %v492
        %v494 = vpop.f32.mrf.mxu0
        %495 = vmatprep.mubr.f32.mxu0 0.0
        %496 = vmatmul.mubr.f32.gmra.mxu0 %v268
        %v497 = vpop.f32.mrf.mxu0
        %v498 = vadd.f32 %v294, %v497
        %v499 = vpop.f32.mrf.mxu0
        %500 = vmatprep.mubr.f32.mxu0 0.0
        %501 = vmatmul.mubr.f32.gmra.mxu0 %v269
        %v502 = vpop.f32.mrf.mxu0
        %v503 = vadd.f32 %v294, %v502
        %v504 = vpop.f32.mrf.mxu0
        %505 = vmatprep.mubr.f32.mxu0 0.0
        %506 = vmatmul.mubr.f32.gmra.mxu0 %v270
        %v507 = vpop.f32.mrf.mxu0
        %v508 = vadd.f32 %v294, %v507
        %v509 = vpop.f32.mrf.mxu0
        %510 = vmatprep.mubr.f32.mxu0 0.0
        %511 = vmatmul.mubr.f32.gmra.mxu0 %v271
        %v512 = vpop.f32.mrf.mxu0
        %v513 = vadd.f32 %v294, %v512
        %v514 = vpop.f32.mrf.mxu0
        %515 = vmatprep.mubr.f32.mxu0 0.0
        %516 = vmatmul.mubr.f32.gmra.mxu0 %v272
        %v517 = vpop.f32.mrf.mxu0
        %v518 = vadd.f32 %v294, %v517
        %v519 = vpop.f32.mrf.mxu0
        %520 = vdwg.mxu0
        %v521 = vmax.f32 %v363, 0.0
        %v522 = vmax.f32 %v368, 0.0
        %v523 = vmax.f32 %v373, 0.0
        %v524 = vmax.f32 %v378, 0.0
        %v525 = vmax.f32 %v383, 0.0
        %v526 = vmax.f32 %v388, 0.0
        %v527 = vmax.f32 %v393, 0.0
        %v528 = vmax.f32 %v398, 0.0
        %v529 = vmax.f32 %v403, 0.0
        %v530 = vmax.f32 %v408, 0.0
        %v531 = vmax.f32 %v413, 0.0
        %v532 = vmax.f32 %v418, 0.0
        %v533 = vmax.f32 %v423, 0.0
        %v534 = vmax.f32 %v428, 0.0
        %v535 = vmax.f32 %v433, 0.0
        %v536 = vmax.f32 %v438, 0.0
        %v537 = vmax.f32 %v443, 0.0
        %v538 = vmax.f32 %v448, 0.0
        %v539 = vmax.f32 %v453, 0.0
        %v540 = vmax.f32 %v458, 0.0
        %v541 = vmax.f32 %v463, 0.0
        %v542 = vmax.f32 %v468, 0.0
        %v543 = vmax.f32 %v473, 0.0
        %v544 = vmax.f32 %v478, 0.0
        %v545 = vmax.f32 %v483, 0.0
        %v546 = vmax.f32 %v488, 0.0
        %v547 = vmax.f32 %v493, 0.0
        %v548 = vmax.f32 %v498, 0.0
        %v549 = vmax.f32 %v503, 0.0
        %v550 = vmax.f32 %v508, 0.0
        %v551 = vmax.f32 %v513, 0.0
        %v552 = vmax.f32 %v518, 0.0
        %553 = vst [vmem:[%s235] sm:$0xff] %v521
        %554 = vst [vmem:[%s235 + $0x8] sm:$0xff] %v522
        %555 = vst [vmem:[%s235 + $0x10] sm:$0xff] %v523
        %556 = vst [vmem:[%s235 + $0x18] sm:$0xff] %v524
        %557 = vst [vmem:[%s235 + $0x20] sm:$0xff] %v525
        %558 = vst [vmem:[%s235 + $0x28] sm:$0xff] %v526
        %559 = vst [vmem:[%s235 + $0x30] sm:$0xff] %v527
        %560 = vst [vmem:[%s235 + $0x38] sm:$0xff] %v528
        %561 = vst [vmem:[%s235 + $0x40] sm:$0xff] %v529
        %562 = vst [vmem:[%s235 + $0x48] sm:$0xff] %v530
        %563 = vst [vmem:[%s235 + $0x50] sm:$0xff] %v531
        %564 = vst [vmem:[%s235 + $0x58] sm:$0xff] %v532
        %565 = vst [vmem:[%s235 + $0x60] sm:$0xff] %v533
        %566 = vst [vmem:[%s235 + $0x68] sm:$0xff] %v534
        %567 = vst [vmem:[%s235 + $0x70] sm:$0xff] %v535
        %568 = vst [vmem:[%s235 + $0x78] sm:$0xff] %v536
        %569 = vst [vmem:[%s235 + $0x80] sm:$0xff] %v537
        %570 = vst [vmem:[%s235 + $0x88] sm:$0xff] %v538
        %571 = vst [vmem:[%s235 + $0x90] sm:$0xff] %v539
        %572 = vst [vmem:[%s235 + $0x98] sm:$0xff] %v540
        %573 = vst [vmem:[%s235 + $0xa0] sm:$0xff] %v541
        %574 = vst [vmem:[%s235 + $0xa8] sm:$0xff] %v542
        %575 = vst [vmem:[%s235 + $0xb0] sm:$0xff] %v543
        %576 = vst [vmem:[%s235 + $0xb8] sm:$0xff] %v544
        %577 = vst [vmem:[%s235 + $0xc0] sm:$0xff] %v545
        %578 = vst [vmem:[%s235 + $0xc8] sm:$0xff] %v546
        %579 = vst [vmem:[%s235 + $0xd0] sm:$0xff] %v547
        %580 = vst [vmem:[%s235 + $0xd8] sm:$0xff] %v548
        %581 = vst [vmem:[%s235 + $0xe0] sm:$0xff] %v549
        %582 = vst [vmem:[%s235 + $0xe8] sm:$0xff] %v550
        %583 = vst [vmem:[%s235 + $0xf0] sm:$0xff] %v551
        %584 = vst [vmem:[%s235 + $0xf8] sm:$0xff] %v552
        %s585 = sand.u32 %s121, 1
        %s586 = scalar_lea.sflag [#allocation4], %s585
        %s587 = sand.u32 %s121, 1
        %s588 = smul.addr %s587, 256
        %s589 = scalar_lea.vmem [#allocation7], %s588
        // Predicated region
        $region41: #{tpu_custom_call.1} parent=31 // pred_check
          %p590 = pneg %p131
        $region42: #{tpu_custom_call.1} parent=31 // pred_check_branch
          %592 = sbr.rel (%p590) target = $region44
        $region43: #{tpu_custom_call.1} parent=31 // pred_region
          %s593 = smul.u32 32, %s25
          %s595 = ssub.s32 4096, 4096
          %596 = vsyncadd %s586, %s595
          %s597 = sadd.s32 %s26, %s593
          %s598 = smul.addr %s597, 128
          %s599 = scalar_lea.hbm %s3, %s598
          %s600 = sshll.u32 %s589, 4
          %s601 = int_to_ptr.vmem [resolvable:$true] %s600
          %606 = dma.vmem_to_hbm [thread:$0]  %s601, 4096, %s599, %s586, 128, 128, 8
        $region44: #{tpu_custom_call.1} parent=31 // pred_fallthru
          _
      $region32: #{tpu_custom_call.1} parent=5 // pred_fallthru
        _
      %p607 = scmp.le.s32.totalorder 2, %s16
      // Predicated region
      $region45: #{tpu_custom_call.1} parent=5 // pred_check
        %p608 = pneg %p607
      $region46: #{tpu_custom_call.1} parent=5 // pred_check_branch
        %610 = sbr.rel (%p608) target = $region48
      $region47: #{tpu_custom_call.1} parent=5 // pred_region
        %s611 = ssub.s32 %s16, 2
        // Predicated region
        $region49: #{tpu_custom_call.1} parent=47 // pred_check
          %p612 = pneg %p137
        $region50: #{tpu_custom_call.1} parent=47 // pred_check_branch
          %614 = sbr.rel (%p612) target = $region52
        $region51: #{tpu_custom_call.1} parent=47 // pred_region
          %s615 = sand.u32 %s122, 1
          %s616 = scalar_lea.sflag [#allocation4], %s615
          %s617 = sand.u32 %s122, 1
          %s618 = smul.addr %s617, 256
          %s619 = scalar_lea.vmem [#allocation7], %s618
          %620 = dma.done %s616, 4096
        $region52: #{tpu_custom_call.1} parent=47 // pred_fallthru
          _
      $region48: #{tpu_custom_call.1} parent=5 // pred_fallthru
        _
    $region6: #{tpu_custom_call.1} parent=1 // loop_footer
      %s20 = sadd.s32 1, %s16
    $region7: #{tpu_custom_call.1} parent=1 // loop_footer_branch
      %15 = sbr.rel target = $region3
    $region8: #{tpu_custom_call.1} parent=1 // loop_exit
      _
    %621 = vsyncpa [#allocation3], 1
    %s622 = scalar_lea.sflag [#allocation3], 1
    %623 = vsyncpa %s622, 1
    %624 = vsyncpa [#allocation6], 1
    %625 = vsyncpa [#allocation4], 1
    %s626 = scalar_lea.sflag [#allocation4], 1
    %627 = vsyncpa %s626, 1

</llo_original>
